<compile_context>
chip_gen: v7x
topology: tpu7x:2x2x1
jax: 0.10.0
libtpu: 0.0.40
codegen_flags: <defaults>
</compile_context>

<pallas_src>
import jax
import jax.numpy as jnp
from jax import lax
from jax.experimental import pallas as pl
from jax.experimental.pallas import tpu as pltpu


def concatnet_kernel(x_ref, w_enc_ref, b_enc_ref, e_t_ref, esqh_ref, wd_ref, bd_ref,
                     recon_ref, lat_ref):
    dim, _ = e_t_ref.shape
    x = x_ref[...]

    # ---- fused encoders: one [TB, D] @ [D, dim+dim_c] matmul, lane split after ----
    enc = jnp.dot(x, w_enc_ref[...], preferred_element_type=jnp.float32) + b_enc_ref[...]
    z_e = enc[:, :dim]      # encoder_vq output
    z_c = enc[:, dim:]      # continuous encoder output

    # ---- VQ nearest neighbour ----
    # argmin_k ||z_e - E_k||^2 == argmin_k (0.5*||E_k||^2 - z_e . E_k)
    # (row-constant ||z_e||^2 dropped; 0.5*||E_k||^2 precomputed in the wrapper).
    dots = jnp.dot(z_e, e_t_ref[...], preferred_element_type=jnp.float32)   # [TB, K]
    scores = esqh_ref[...] - dots
    idx = jnp.argmin(scores, axis=-1, keepdims=True)                        # [TB, 1]

    # Straight-through forward value: z_q = E[idx] via one-hot row gather on the MXU.
    # TODO(synk): for very large K this should become a DMA-based row gather; at
    # K=512 x dim=16 the one-hot matmul cost is negligible.
    col = lax.broadcasted_iota(jnp.int32, scores.shape, 1)
    one_hot = (col == idx).astype(jnp.float32)
    z_q = lax.dot_general(one_hot, e_t_ref[...], (((1,), (1,)), ((), ())),
                          preferred_element_type=jnp.float32)               # [TB, dim]

    # ---- decoder on in-register concat z = [z_q | z_c], single matmul ----
    z = jnp.concatenate([z_q, z_c], axis=-1)                                # [TB, dim+dim_c]
    recon_ref[...] = (jnp.dot(z, wd_ref[...], preferred_element_type=jnp.float32)
                      + bd_ref[...])

    # ---- packed latent output: [z_e | z_q | z_c] in one lane-contiguous store ----
    lat_ref[...] = jnp.concatenate([z_e, z], axis=-1)


def concatnet_forward(x, wvq, bvq, wc, bc, codebook, wd, bd, *, block_b=256):
    """Returns (x_recon, z, z_e_x, z_q_x) matching ConcatNet.forward semantics."""
    B, D = x.shape
    dim = wvq.shape[1]
    dim_c = wc.shape[1]
    K = codebook.shape[0]

    def round8(n):
        return ((n + 7) // 8) * 8

    # Batch tile: multiple of 8 sublanes, capped at block_b.
    TB = min(block_b, round8(B))
    # When the whole batch would fit in one grid step, split it in two so the
    # "parallel" batch axis can shard across v7x's 2 TensorCores.
    if round8(B) <= block_b and B >= 16:
        TB = round8(pl.cdiv(B, 2))
    TB = max(8, round8(TB))
    Bp = ((B + TB - 1) // TB) * TB
    if Bp != B:
        x = jnp.pad(x, ((0, Bp - B), (0, 0)))

    # Loop-invariant hoists, done once in the wrapper.
    w_enc = jnp.concatenate([wvq, wc], axis=1)                       # [D, dim+dim_c]
    b_enc = jnp.concatenate([bvq, bc]).reshape(1, dim + dim_c)
    e_t = codebook.T                                                 # [dim, K], lane-dense
    esq_half = (0.5 * jnp.sum(codebook * codebook, axis=1)).reshape(1, K)

    grid = (Bp // TB,)
    row_spec = lambda shape: pl.BlockSpec(shape, lambda i: (i, 0))
    inv_spec = lambda shape: pl.BlockSpec(shape, lambda i: (0, 0))   # loop-invariant

    cp_kwargs = dict(dimension_semantics=("parallel",))
    if TB > 256:
        # v5e default scoped VMEM is 16 MiB; raise it for big batch tiles
        # (keep below v7x's 64 MiB physical per-core VMEM).
        cp_kwargs["vmem_limit_bytes"] = 60 * 1024 * 1024

    recon, lat = pl.pallas_call(
        concatnet_kernel,
        grid=grid,
        in_specs=[
            row_spec((TB, D)),                       # x (tiled over batch)
            inv_spec((D, dim + dim_c)),              # fused encoder weight
            inv_spec((1, dim + dim_c)),              # fused encoder bias
            inv_spec((dim, K)),                      # codebook^T (lane-dense)
            inv_spec((1, K)),                        # 0.5*||E_k||^2
            inv_spec((dim + dim_c, D)),              # decoder weight (original layout)
            inv_spec((1, D)),                        # decoder bias
        ],
        out_specs=(
            row_spec((TB, D)),                       # recon (lane-dense)
            row_spec((TB, 2 * dim + dim_c)),         # packed [z_e | z_q | z_c]
        ),
        out_shape=(
            jax.ShapeDtypeStruct((Bp, D), jnp.float32),
            jax.ShapeDtypeStruct((Bp, 2 * dim + dim_c), jnp.float32),
        ),
        compiler_params=pltpu.CompilerParams(**cp_kwargs),
    )(x, w_enc, b_enc, e_t, esq_half, wd, bd.reshape(1, D))

    if Bp != B:
        recon, lat = recon[:B], lat[:B]
    z_e = lat[:, :dim]                 # z_e_x
    z_q = lat[:, dim:2 * dim]          # z_q_x (== z_q_x_st forward value)
    z = lat[:, dim:]                   # concat([z_q_x_st, z_cont], 1) -- contiguous slice
    return recon, z, z_e, z_q


if __name__ == "__main__":
    # Small shapes: x = [2, 4, 16, 16] flattened to [2, 1024] (lane-dense D),
    # discrete latent dim=16, continuous latent dim_c=16, codebook K=512.
    B, C, H, W = 2, 4, 16, 16
    D = C * H * W
    dim, dim_c, K = 16, 16, 512

    key = jax.random.PRNGKey(0)
    kx, k1, k2, k3, k4, k5, k6, k7 = jax.random.split(key, 8)

    x_img = jax.random.normal(kx, (B, C, H, W), jnp.float32)
    x = x_img.reshape(B, D)

    lim_e = 1.0 / jnp.sqrt(jnp.float32(D))
    lim_d = 1.0 / jnp.sqrt(jnp.float32(dim + dim_c))
    wvq = jax.random.uniform(k1, (D, dim), jnp.float32, -lim_e, lim_e)
    bvq = jax.random.uniform(k2, (dim,), jnp.float32, -lim_e, lim_e)
    wc = jax.random.uniform(k3, (D, dim_c), jnp.float32, -lim_e, lim_e)
    bc = jax.random.uniform(k4, (dim_c,), jnp.float32, -lim_e, lim_e)
    codebook = jax.random.normal(k5, (K, dim), jnp.float32)
    wd = jax.random.uniform(k6, (dim + dim_c, D), jnp.float32, -lim_d, lim_d)
    bd = jax.random.uniform(k7, (D,), jnp.float32, -lim_d, lim_d)

    recon, z, z_e, z_q = concatnet_forward(x, wvq, bvq, wc, bc, codebook, wd, bd)
    jax.block_until_ready((recon, z, z_e, z_q))

    # Pure-JAX reference of the same forward.
    z_e_ref = x @ wvq + bvq
    z_c_ref = x @ wc + bc
    d = (jnp.sum(z_e_ref ** 2, axis=1, keepdims=True)
         - 2.0 * z_e_ref @ codebook.T
         + jnp.sum(codebook ** 2, axis=1))
    idx_ref = jnp.argmin(d, axis=1)
    z_q_ref = codebook[idx_ref]
    z_ref = jnp.concatenate([z_q_ref, z_c_ref], axis=1)
    recon_ref = z_ref @ wd + bd

    assert recon.shape == (B, D) and z.shape == (B, dim + dim_c)
    assert z_e.shape == (B, dim) and z_q.shape == (B, dim)
    assert bool(jnp.allclose(z_e, z_e_ref, atol=1e-4, rtol=1e-4))
    assert bool(jnp.allclose(z_q, z_q_ref, atol=1e-4, rtol=1e-4))
    assert bool(jnp.allclose(z, z_ref, atol=1e-4, rtol=1e-4))
    assert bool(jnp.allclose(recon, recon_ref, atol=1e-4, rtol=1e-4))

    print("KERNEL_OK")
</pallas_src>

<mosaic_0001>
module attributes {stable_mosaic.version = 11 : i64} {
  func.func @concatnet_kernel(%arg0: i32, %arg1: memref<8x1024xf32, #tpu.memory_space<vmem>>, %arg2: memref<1024x32xf32, #tpu.memory_space<vmem>>, %arg3: memref<1x32xf32, #tpu.memory_space<vmem>>, %arg4: memref<16x512xf32, #tpu.memory_space<vmem>>, %arg5: memref<1x512xf32, #tpu.memory_space<vmem>>, %arg6: memref<32x1024xf32, #tpu.memory_space<vmem>>, %arg7: memref<1x1024xf32, #tpu.memory_space<vmem>>, %arg8: memref<8x1024xf32, #tpu.memory_space<vmem>>, %arg9: memref<8x48xf32, #tpu.memory_space<vmem>>) attributes {dimension_semantics = [#tpu.dimension_semantics<parallel>], iteration_bounds = array<i64: 1>, scalar_prefetch = 0 : i64, scratch_operands = 0 : i64, tpu.core_type = #tpu.core_type<tc>, window_params = [{transform_indices = @transform_0, window_bounds = array<i64: 8, 1024>}, {pipeline_mode = #tpu.pipeline_mode<synchronous>, transform_indices = @transform_1, window_bounds = array<i64: 1024, 32>}, {pipeline_mode = #tpu.pipeline_mode<synchronous>, transform_indices = @transform_2, window_bounds = array<i64: 1, 32>}, {pipeline_mode = #tpu.pipeline_mode<synchronous>, transform_indices = @transform_3, window_bounds = array<i64: 16, 512>}, {pipeline_mode = #tpu.pipeline_mode<synchronous>, transform_indices = @transform_4, window_bounds = array<i64: 1, 512>}, {pipeline_mode = #tpu.pipeline_mode<synchronous>, transform_indices = @transform_5, window_bounds = array<i64: 32, 1024>}, {pipeline_mode = #tpu.pipeline_mode<synchronous>, transform_indices = @transform_6, window_bounds = array<i64: 1, 1024>}, {transform_indices = @transform_7, window_bounds = array<i64: 8, 1024>}, {transform_indices = @transform_8, window_bounds = array<i64: 8, 48>}]} {
    %c0 = arith.constant 0 : index
    %c0_0 = arith.constant 0 : index
    %0 = vector.load %arg1[%c0, %c0_0] : memref<8x1024xf32, #tpu.memory_space<vmem>>, vector<8x1024xf32>
    %c0_1 = arith.constant 0 : index
    %c0_2 = arith.constant 0 : index
    %1 = vector.load %arg2[%c0_1, %c0_2] : memref<1024x32xf32, #tpu.memory_space<vmem>>, vector<1024x32xf32>
    %cst = arith.constant dense<0.000000e+00> : vector<8x32xf32>
    %2 = tpu.matmul %0, %1, %cst {dimension_numbers = #tpu.dot_dimension_numbers<[1], [0], [0], [1], [0, 0, 1, 1], [], []>} : vector<8x1024xf32>, vector<1024x32xf32>, vector<8x32xf32> -> vector<8x32xf32>
    %c0_3 = arith.constant 0 : index
    %c0_4 = arith.constant 0 : index
    %3 = vector.load %arg3[%c0_3, %c0_4] : memref<1x32xf32, #tpu.memory_space<vmem>>, vector<1x32xf32>
    %4 = vector.broadcast %3 : vector<1x32xf32> to vector<8x32xf32>
    %5 = arith.addf %2, %4 : vector<8x32xf32>
    %6 = vector.extract_strided_slice %5 {offsets = [0, 0], sizes = [8, 16], strides = [1, 1]} : vector<8x32xf32> to vector<8x16xf32>
    %7 = vector.extract_strided_slice %5 {offsets = [0, 16], sizes = [8, 16], strides = [1, 1]} : vector<8x32xf32> to vector<8x16xf32>
    %c0_5 = arith.constant 0 : index
    %c0_6 = arith.constant 0 : index
    %8 = vector.load %arg4[%c0_5, %c0_6] : memref<16x512xf32, #tpu.memory_space<vmem>>, vector<16x512xf32>
    %cst_7 = arith.constant dense<0.000000e+00> : vector<8x512xf32>
    %9 = tpu.matmul %6, %8, %cst_7 {dimension_numbers = #tpu.dot_dimension_numbers<[1], [0], [0], [1], [0, 0, 1, 1], [], []>} : vector<8x16xf32>, vector<16x512xf32>, vector<8x512xf32> -> vector<8x512xf32>
    %c0_8 = arith.constant 0 : index
    %c0_9 = arith.constant 0 : index
    %10 = vector.load %arg5[%c0_8, %c0_9] : memref<1x512xf32, #tpu.memory_space<vmem>>, vector<1x512xf32>
    %11 = vector.broadcast %10 : vector<1x512xf32> to vector<8x512xf32>
    %12 = arith.subf %11, %9 : vector<8x512xf32>
    %13 = tpu.reduce_index %12 {axis = 1 : i32, kind = #tpu.reduction_kind<arg_min>} : vector<8x512xf32> -> vector<8xi32>
    %14 = vector.shape_cast %13 : vector<8xi32> to vector<8x1xi32>
    %15 = tpu.iota {dimensions = array<i32: 1>} : vector<8x512xi32>
    %16 = vector.broadcast %14 : vector<8x1xi32> to vector<8x512xi32>
    %17 = arith.cmpi eq, %15, %16 : vector<8x512xi32>
    %18 = arith.extui %17 : vector<8x512xi1> to vector<8x512xi32>
    %19 = arith.sitofp %18 : vector<8x512xi32> to vector<8x512xf32>
    %c0_10 = arith.constant 0 : index
    %c0_11 = arith.constant 0 : index
    %20 = vector.load %arg4[%c0_10, %c0_11] : memref<16x512xf32, #tpu.memory_space<vmem>>, vector<16x512xf32>
    %cst_12 = arith.constant dense<0.000000e+00> : vector<8x16xf32>
    %21 = tpu.matmul %19, %20, %cst_12 {dimension_numbers = #tpu.dot_dimension_numbers<[1], [1], [0], [0], [0, 0, 1, 0], [], []>} : vector<8x512xf32>, vector<16x512xf32>, vector<8x16xf32> -> vector<8x16xf32>
    %22 = tpu.concatenate %21, %7 in 1 : vector<8x16xf32>, vector<8x16xf32> -> vector<8x32xf32>
    %c0_13 = arith.constant 0 : index
    %c0_14 = arith.constant 0 : index
    %23 = vector.load %arg6[%c0_13, %c0_14] : memref<32x1024xf32, #tpu.memory_space<vmem>>, vector<32x1024xf32>
    %cst_15 = arith.constant dense<0.000000e+00> : vector<8x1024xf32>
    %24 = tpu.matmul %22, %23, %cst_15 {dimension_numbers = #tpu.dot_dimension_numbers<[1], [0], [0], [1], [0, 0, 1, 1], [], []>} : vector<8x32xf32>, vector<32x1024xf32>, vector<8x1024xf32> -> vector<8x1024xf32>
    %c0_16 = arith.constant 0 : index
    %c0_17 = arith.constant 0 : index
    %25 = vector.load %arg7[%c0_16, %c0_17] : memref<1x1024xf32, #tpu.memory_space<vmem>>, vector<1x1024xf32>
    %26 = vector.broadcast %25 : vector<1x1024xf32> to vector<8x1024xf32>
    %27 = arith.addf %24, %26 : vector<8x1024xf32>
    %c0_18 = arith.constant 0 : index
    %c0_19 = arith.constant 0 : index
    %28 = vector.load %arg8[%c0_18, %c0_19] : memref<8x1024xf32, #tpu.memory_space<vmem>>, vector<8x1024xf32>
    tpu.vector_store %arg8[%c0_18, %c0_19], %27 {strides = array<i32>} : memref<8x1024xf32, #tpu.memory_space<vmem>>, vector<8x1024xf32>,
    %29 = tpu.concatenate %6, %22 in 1 : vector<8x16xf32>, vector<8x32xf32> -> vector<8x48xf32>
    %c0_20 = arith.constant 0 : index
    %c0_21 = arith.constant 0 : index
    %30 = vector.load %arg9[%c0_20, %c0_21] : memref<8x48xf32, #tpu.memory_space<vmem>>, vector<8x48xf32>
    tpu.vector_store %arg9[%c0_20, %c0_21], %29 {strides = array<i32>} : memref<8x48xf32, #tpu.memory_space<vmem>>, vector<8x48xf32>,
    return
  }
  func.func @transform_0(%arg0: i32) -> (i32, i32) {
    %c0_i32 = arith.constant 0 : i32
    %c0_i32_0 = arith.constant 0 : i32
    return %arg0, %c0_i32 : i32, i32
  }
  func.func @transform_1(%arg0: i32) -> (i32, i32) {
    %c0_i32 = arith.constant 0 : i32
    %c0_i32_0 = arith.constant 0 : i32
    %c0_i32_1 = arith.constant 0 : i32
    return %c0_i32, %c0_i32_0 : i32, i32
  }
  func.func @transform_2(%arg0: i32) -> (i32, i32) {
    %c0_i32 = arith.constant 0 : i32
    %c0_i32_0 = arith.constant 0 : i32
    %c0_i32_1 = arith.constant 0 : i32
    return %c0_i32, %c0_i32_0 : i32, i32
  }
  func.func @transform_3(%arg0: i32) -> (i32, i32) {
    %c0_i32 = arith.constant 0 : i32
    %c0_i32_0 = arith.constant 0 : i32
    %c0_i32_1 = arith.constant 0 : i32
    return %c0_i32, %c0_i32_0 : i32, i32
  }
  func.func @transform_4(%arg0: i32) -> (i32, i32) {
    %c0_i32 = arith.constant 0 : i32
    %c0_i32_0 = arith.constant 0 : i32
    %c0_i32_1 = arith.constant 0 : i32
    return %c0_i32, %c0_i32_0 : i32, i32
  }
  func.func @transform_5(%arg0: i32) -> (i32, i32) {
    %c0_i32 = arith.constant 0 : i32
    %c0_i32_0 = arith.constant 0 : i32
    %c0_i32_1 = arith.constant 0 : i32
    return %c0_i32, %c0_i32_0 : i32, i32
  }
  func.func @transform_6(%arg0: i32) -> (i32, i32) {
    %c0_i32 = arith.constant 0 : i32
    %c0_i32_0 = arith.constant 0 : i32
    %c0_i32_1 = arith.constant 0 : i32
    return %c0_i32, %c0_i32_0 : i32, i32
  }
  func.func @transform_7(%arg0: i32) -> (i32, i32) {
    %c0_i32 = arith.constant 0 : i32
    %c0_i32_0 = arith.constant 0 : i32
    return %arg0, %c0_i32 : i32, i32
  }
  func.func @transform_8(%arg0: i32) -> (i32, i32) {
    %c0_i32 = arith.constant 0 : i32
    %c0_i32_0 = arith.constant 0 : i32
    return %arg0, %c0_i32 : i32, i32
  }
}

</mosaic_0001>

<llo_original>
// kernel: tpu_custom_call.1
$region0: #{tpu_custom_call.1}
  #allocation0 [shape = 'u32[]', space=smem, size = 0x4, offset = 0x4, fixed_abs, tag = 'smem constant byte address 0x4 - core index']
  #allocation1 [shape = 'u32[144,128]{1,0:T(1,128)}', space=vmem, size = 0x12000, scoped, tag = 'internal scratch']
  %s0 = inlined_call_operand.vmem [shape: f32[8,1024], index: 0, kind: input, shape index: {}]
  %s1 = inlined_call_operand.vmem [shape: f32[1024,32], index: 1, kind: input, shape index: {}]
  %s2 = inlined_call_operand.vmem [shape: f32[1,32], index: 2, kind: input, shape index: {}]
  %s3 = inlined_call_operand.vmem [shape: f32[16,512], index: 3, kind: input, shape index: {}]
  %s4 = inlined_call_operand.vmem [shape: f32[1,512], index: 4, kind: input, shape index: {}]
  %s5 = inlined_call_operand.vmem [shape: f32[32,1024], index: 5, kind: input, shape index: {}]
  %s6 = inlined_call_operand.vmem [shape: f32[1,1024], index: 6, kind: input, shape index: {}]
  %s7 = inlined_call_operand.hbm [shape: f32[8,1024], index: 7, kind: output, shape index: {0}]
  %s8 = inlined_call_operand.hbm [shape: f32[8,48], index: 8, kind: output, shape index: {1}]
  %9 = xla_tuple %s7, %s8
  %s10 = sld [smem:[#allocation0]]
  $region46: #{tpu_custom_call.1} parent=0
    _
  %s12 = ssub.s32 1, %s10
  %s13 = scalar_select 0, %s12, %s10
  $region1: #{tpu_custom_call.1} parent=0
    #allocation2 [shape = 'u8[32768]{0}', space=vmem, size = 0x8000, scoped, tag = 'output window, operand 0, single buffered']
    #allocation3 [shape = 's32[1]{0}', space=sflag, size = 0x4, scoped, tag = 'scoped memory for tpu_custom_call.1']
    #allocation4 [shape = 'u8[4096]{0}', space=vmem, size = 0x1000, scoped, tag = 'output window, operand 1, single buffered']
    #allocation5 [shape = 's32[1]{0}', space=sflag, size = 0x4, scoped, tag = 'scoped memory for tpu_custom_call.1']
    %14 = vsyncpa [#allocation3], 0
    %15 = vsyncpa [#allocation5], 0
    // Predicated region
    $region2: #{tpu_custom_call.1} parent=1 // pred_check
      _
    $region3: #{tpu_custom_call.1} parent=1 // pred_check_branch
      %17 = sbr.rel (0) target = $region5
    $region4: #{tpu_custom_call.1} parent=1 // pred_region
      _
    $region5: #{tpu_custom_call.1} parent=1 // pred_fallthru
      _
    // Predicated region
    $region6: #{tpu_custom_call.1} parent=1 // pred_check
      _
    $region7: #{tpu_custom_call.1} parent=1 // pred_check_branch
      %19 = sbr.rel (0) target = $region9
    $region8: #{tpu_custom_call.1} parent=1 // pred_region
      _
    $region9: #{tpu_custom_call.1} parent=1 // pred_fallthru
      _
    // Predicated region
    $region10: #{tpu_custom_call.1} parent=1 // pred_check
      _
    $region11: #{tpu_custom_call.1} parent=1 // pred_check_branch
      %21 = sbr.rel (0) target = $region13
    $region12: #{tpu_custom_call.1} parent=1 // pred_region
      _
    $region13: #{tpu_custom_call.1} parent=1 // pred_fallthru
      _
    // Predicated region
    $region14: #{tpu_custom_call.1} parent=1 // pred_check
      _
    $region15: #{tpu_custom_call.1} parent=1 // pred_check_branch
      %23 = sbr.rel (0) target = $region17
    $region16: #{tpu_custom_call.1} parent=1 // pred_region
      _
    $region17: #{tpu_custom_call.1} parent=1 // pred_fallthru
      _
    // Predicated region
    $region18: #{tpu_custom_call.1} parent=1 // pred_check
      _
    $region19: #{tpu_custom_call.1} parent=1 // pred_check_branch
      %25 = sbr.rel (0) target = $region21
    $region20: #{tpu_custom_call.1} parent=1 // pred_region
      _
    $region21: #{tpu_custom_call.1} parent=1 // pred_fallthru
      _
    // Predicated region
    $region22: #{tpu_custom_call.1} parent=1 // pred_check
      _
    $region23: #{tpu_custom_call.1} parent=1 // pred_check_branch
      %27 = sbr.rel (0) target = $region25
    $region24: #{tpu_custom_call.1} parent=1 // pred_region
      _
    $region25: #{tpu_custom_call.1} parent=1 // pred_fallthru
      _
    // Predicated region
    $region26: #{tpu_custom_call.1} parent=1 // pred_check
      _
    $region27: #{tpu_custom_call.1} parent=1 // pred_check_branch
      %29 = sbr.rel (0) target = $region29
    $region28: #{tpu_custom_call.1} parent=1 // pred_region
      _
    $region29: #{tpu_custom_call.1} parent=1 // pred_fallthru
      _
    %v30 = vld [vmem:[%s0] sm:$0xff]
    %v31 = vld [vmem:[%s0 + $0x8] sm:$0xff]
    %v32 = vld [vmem:[%s0 + $0x10] sm:$0xff]
    %v33 = vld [vmem:[%s0 + $0x18] sm:$0xff]
    %v34 = vld [vmem:[%s0 + $0x20] sm:$0xff]
    %v35 = vld [vmem:[%s0 + $0x28] sm:$0xff]
    %v36 = vld [vmem:[%s0 + $0x30] sm:$0xff]
    %v37 = vld [vmem:[%s0 + $0x38] sm:$0xff]
    %v38 = vld [vmem:[%s1] sm:$0xff]
    %v39 = vld [vmem:[%s1 + $0x8] sm:$0xff]
    %v40 = vld [vmem:[%s1 + $0x10] sm:$0xff]
    %v41 = vld [vmem:[%s1 + $0x18] sm:$0xff]
    %v42 = vld [vmem:[%s1 + $0x20] sm:$0xff]
    %v43 = vld [vmem:[%s1 + $0x28] sm:$0xff]
    %v44 = vld [vmem:[%s1 + $0x30] sm:$0xff]
    %v45 = vld [vmem:[%s1 + $0x38] sm:$0xff]
    %v46 = vld [vmem:[%s1 + $0x40] sm:$0xff]
    %v47 = vld [vmem:[%s1 + $0x48] sm:$0xff]
    %v48 = vld [vmem:[%s1 + $0x50] sm:$0xff]
    %v49 = vld [vmem:[%s1 + $0x58] sm:$0xff]
    %v50 = vld [vmem:[%s1 + $0x60] sm:$0xff]
    %v51 = vld [vmem:[%s1 + $0x68] sm:$0xff]
    %v52 = vld [vmem:[%s1 + $0x70] sm:$0xff]
    %v53 = vld [vmem:[%s1 + $0x78] sm:$0xff]
    %v54 = vld [vmem:[%s1 + $0x80] sm:$0xff]
    %v55 = vld [vmem:[%s1 + $0x88] sm:$0xff]
    %v56 = vld [vmem:[%s1 + $0x90] sm:$0xff]
    %v57 = vld [vmem:[%s1 + $0x98] sm:$0xff]
    %v58 = vld [vmem:[%s1 + $0xa0] sm:$0xff]
    %v59 = vld [vmem:[%s1 + $0xa8] sm:$0xff]
    %v60 = vld [vmem:[%s1 + $0xb0] sm:$0xff]
    %v61 = vld [vmem:[%s1 + $0xb8] sm:$0xff]
    %v62 = vld [vmem:[%s1 + $0xc0] sm:$0xff]
    %v63 = vld [vmem:[%s1 + $0xc8] sm:$0xff]
    %v64 = vld [vmem:[%s1 + $0xd0] sm:$0xff]
    %v65 = vld [vmem:[%s1 + $0xd8] sm:$0xff]
    %v66 = vld [vmem:[%s1 + $0xe0] sm:$0xff]
    %v67 = vld [vmem:[%s1 + $0xe8] sm:$0xff]
    %v68 = vld [vmem:[%s1 + $0xf0] sm:$0xff]
    %v69 = vld [vmem:[%s1 + $0xf8] sm:$0xff]
    %v70 = vld [vmem:[%s1 + $0x100] sm:$0xff]
    %v71 = vld [vmem:[%s1 + $0x108] sm:$0xff]
    %v72 = vld [vmem:[%s1 + $0x110] sm:$0xff]
    %v73 = vld [vmem:[%s1 + $0x118] sm:$0xff]
    %v74 = vld [vmem:[%s1 + $0x120] sm:$0xff]
    %v75 = vld [vmem:[%s1 + $0x128] sm:$0xff]
    %v76 = vld [vmem:[%s1 + $0x130] sm:$0xff]
    %v77 = vld [vmem:[%s1 + $0x138] sm:$0xff]
    %v78 = vld [vmem:[%s1 + $0x140] sm:$0xff]
    %v79 = vld [vmem:[%s1 + $0x148] sm:$0xff]
    %v80 = vld [vmem:[%s1 + $0x150] sm:$0xff]
    %v81 = vld [vmem:[%s1 + $0x158] sm:$0xff]
    %v82 = vld [vmem:[%s1 + $0x160] sm:$0xff]
    %v83 = vld [vmem:[%s1 + $0x168] sm:$0xff]
    %v84 = vld [vmem:[%s1 + $0x170] sm:$0xff]
    %v85 = vld [vmem:[%s1 + $0x178] sm:$0xff]
    %v86 = vld [vmem:[%s1 + $0x180] sm:$0xff]
    %v87 = vld [vmem:[%s1 + $0x188] sm:$0xff]
    %v88 = vld [vmem:[%s1 + $0x190] sm:$0xff]
    %v89 = vld [vmem:[%s1 + $0x198] sm:$0xff]
    %v90 = vld [vmem:[%s1 + $0x1a0] sm:$0xff]
    %v91 = vld [vmem:[%s1 + $0x1a8] sm:$0xff]
    %v92 = vld [vmem:[%s1 + $0x1b0] sm:$0xff]
    %v93 = vld [vmem:[%s1 + $0x1b8] sm:$0xff]
    %v94 = vld [vmem:[%s1 + $0x1c0] sm:$0xff]
    %v95 = vld [vmem:[%s1 + $0x1c8] sm:$0xff]
    %v96 = vld [vmem:[%s1 + $0x1d0] sm:$0xff]
    %v97 = vld [vmem:[%s1 + $0x1d8] sm:$0xff]
    %v98 = vld [vmem:[%s1 + $0x1e0] sm:$0xff]
    %v99 = vld [vmem:[%s1 + $0x1e8] sm:$0xff]
    %v100 = vld [vmem:[%s1 + $0x1f0] sm:$0xff]
    %v101 = vld [vmem:[%s1 + $0x1f8] sm:$0xff]
    %v102 = vld [vmem:[%s1 + $0x200] sm:$0xff]
    %v103 = vld [vmem:[%s1 + $0x208] sm:$0xff]
    %v104 = vld [vmem:[%s1 + $0x210] sm:$0xff]
    %v105 = vld [vmem:[%s1 + $0x218] sm:$0xff]
    %v106 = vld [vmem:[%s1 + $0x220] sm:$0xff]
    %v107 = vld [vmem:[%s1 + $0x228] sm:$0xff]
    %v108 = vld [vmem:[%s1 + $0x230] sm:$0xff]
    %v109 = vld [vmem:[%s1 + $0x238] sm:$0xff]
    %v110 = vld [vmem:[%s1 + $0x240] sm:$0xff]
    %v111 = vld [vmem:[%s1 + $0x248] sm:$0xff]
    %v112 = vld [vmem:[%s1 + $0x250] sm:$0xff]
    %v113 = vld [vmem:[%s1 + $0x258] sm:$0xff]
    %v114 = vld [vmem:[%s1 + $0x260] sm:$0xff]
    %v115 = vld [vmem:[%s1 + $0x268] sm:$0xff]
    %v116 = vld [vmem:[%s1 + $0x270] sm:$0xff]
    %v117 = vld [vmem:[%s1 + $0x278] sm:$0xff]
    %v118 = vld [vmem:[%s1 + $0x280] sm:$0xff]
    %v119 = vld [vmem:[%s1 + $0x288] sm:$0xff]
    %v120 = vld [vmem:[%s1 + $0x290] sm:$0xff]
    %v121 = vld [vmem:[%s1 + $0x298] sm:$0xff]
    %v122 = vld [vmem:[%s1 + $0x2a0] sm:$0xff]
    %v123 = vld [vmem:[%s1 + $0x2a8] sm:$0xff]
    %v124 = vld [vmem:[%s1 + $0x2b0] sm:$0xff]
    %v125 = vld [vmem:[%s1 + $0x2b8] sm:$0xff]
    %v126 = vld [vmem:[%s1 + $0x2c0] sm:$0xff]
    %v127 = vld [vmem:[%s1 + $0x2c8] sm:$0xff]
    %v128 = vld [vmem:[%s1 + $0x2d0] sm:$0xff]
    %v129 = vld [vmem:[%s1 + $0x2d8] sm:$0xff]
    %v130 = vld [vmem:[%s1 + $0x2e0] sm:$0xff]
    %v131 = vld [vmem:[%s1 + $0x2e8] sm:$0xff]
    %v132 = vld [vmem:[%s1 + $0x2f0] sm:$0xff]
    %v133 = vld [vmem:[%s1 + $0x2f8] sm:$0xff]
    %v134 = vld [vmem:[%s1 + $0x300] sm:$0xff]
    %v135 = vld [vmem:[%s1 + $0x308] sm:$0xff]
    %v136 = vld [vmem:[%s1 + $0x310] sm:$0xff]
    %v137 = vld [vmem:[%s1 + $0x318] sm:$0xff]
    %v138 = vld [vmem:[%s1 + $0x320] sm:$0xff]
    %v139 = vld [vmem:[%s1 + $0x328] sm:$0xff]
    %v140 = vld [vmem:[%s1 + $0x330] sm:$0xff]
    %v141 = vld [vmem:[%s1 + $0x338] sm:$0xff]
    %v142 = vld [vmem:[%s1 + $0x340] sm:$0xff]
    %v143 = vld [vmem:[%s1 + $0x348] sm:$0xff]
    %v144 = vld [vmem:[%s1 + $0x350] sm:$0xff]
    %v145 = vld [vmem:[%s1 + $0x358] sm:$0xff]
    %v146 = vld [vmem:[%s1 + $0x360] sm:$0xff]
    %v147 = vld [vmem:[%s1 + $0x368] sm:$0xff]
    %v148 = vld [vmem:[%s1 + $0x370] sm:$0xff]
    %v149 = vld [vmem:[%s1 + $0x378] sm:$0xff]
    %v150 = vld [vmem:[%s1 + $0x380] sm:$0xff]
    %v151 = vld [vmem:[%s1 + $0x388] sm:$0xff]
    %v152 = vld [vmem:[%s1 + $0x390] sm:$0xff]
    %v153 = vld [vmem:[%s1 + $0x398] sm:$0xff]
    %v154 = vld [vmem:[%s1 + $0x3a0] sm:$0xff]
    %v155 = vld [vmem:[%s1 + $0x3a8] sm:$0xff]
    %v156 = vld [vmem:[%s1 + $0x3b0] sm:$0xff]
    %v157 = vld [vmem:[%s1 + $0x3b8] sm:$0xff]
    %v158 = vld [vmem:[%s1 + $0x3c0] sm:$0xff]
    %v159 = vld [vmem:[%s1 + $0x3c8] sm:$0xff]
    %v160 = vld [vmem:[%s1 + $0x3d0] sm:$0xff]
    %v161 = vld [vmem:[%s1 + $0x3d8] sm:$0xff]
    %v162 = vld [vmem:[%s1 + $0x3e0] sm:$0xff]
    %v163 = vld [vmem:[%s1 + $0x3e8] sm:$0xff]
    %v164 = vld [vmem:[%s1 + $0x3f0] sm:$0xff]
    %v165 = vld [vmem:[%s1 + $0x3f8] sm:$0xff]
    %v166 = vld [vmem:[%s2] sm:$0x1]
    %v168 = vlaneseq
    %v169 = vshrl.u32 %v168, 7
    %v170 = vsub.s32 0, %v169
    %v171 = vrot.slane %v166, %v170
    %173 = vmatprep.subr.mxu0 0.0
    %174 = vmatpush1.msra.mxu0 %v38
    %175 = vmatprep.subr.mxu0 0.0
    %176 = vmatpush1.msra.mxu0 %v39
    %177 = vmatprep.subr.mxu0 0.0
    %178 = vmatpush1.msra.mxu0 %v40
    %179 = vmatprep.subr.mxu0 0.0
    %180 = vmatpush1.msra.mxu0 %v41
    %181 = vmatprep.subr.mxu0 0.0
    %182 = vmatpush1.msra.mxu0 %v42
    %183 = vmatprep.subr.mxu0 0.0
    %184 = vmatpush1.msra.mxu0 %v43
    %185 = vmatprep.subr.mxu0 0.0
    %186 = vmatpush1.msra.mxu0 %v44
    %187 = vmatprep.subr.mxu0 0.0
    %188 = vmatpush1.msra.mxu0 %v45
    %189 = vmatprep.subr.mxu0 0.0
    %190 = vmatpush1.msra.mxu0 %v46
    %191 = vmatprep.subr.mxu0 0.0
    %192 = vmatpush1.msra.mxu0 %v47
    %193 = vmatprep.subr.mxu0 0.0
    %194 = vmatpush1.msra.mxu0 %v48
    %195 = vmatprep.subr.mxu0 0.0
    %196 = vmatpush1.msra.mxu0 %v49
    %197 = vmatprep.subr.mxu0 0.0
    %198 = vmatpush1.msra.mxu0 %v50
    %199 = vmatprep.subr.mxu0 0.0
    %200 = vmatpush1.msra.mxu0 %v51
    %201 = vmatprep.subr.mxu0 0.0
    %202 = vmatpush1.msra.mxu0 %v52
    %203 = vmatprep.subr.mxu0 0.0
    %204 = vmatpush1.msra.mxu0 %v53
    %205 = vmatprep.subr.mxu0 0.0
    %206 = vmatpush1.msra.mxu0 %v54
    %207 = vmatprep.subr.mxu0 0.0
    %208 = vmatpush1.msra.mxu0 %v55
    %209 = vmatprep.subr.mxu0 0.0
    %210 = vmatpush1.msra.mxu0 %v56
    %211 = vmatprep.subr.mxu0 0.0
    %212 = vmatpush1.msra.mxu0 %v57
    %213 = vmatprep.subr.mxu0 0.0
    %214 = vmatpush1.msra.mxu0 %v58
    %215 = vmatprep.subr.mxu0 0.0
    %216 = vmatpush1.msra.mxu0 %v59
    %217 = vmatprep.subr.mxu0 0.0
    %218 = vmatpush1.msra.mxu0 %v60
    %219 = vmatprep.subr.mxu0 0.0
    %220 = vmatpush1.msra.mxu0 %v61
    %221 = vmatprep.subr.mxu0 0.0
    %222 = vmatpush1.msra.mxu0 %v62
    %223 = vmatprep.subr.mxu0 0.0
    %224 = vmatpush1.msra.mxu0 %v63
    %225 = vmatprep.subr.mxu0 0.0
    %226 = vmatpush1.msra.mxu0 %v64
    %227 = vmatprep.subr.mxu0 0.0
    %228 = vmatpush1.msra.mxu0 %v65
    %229 = vmatprep.subr.mxu0 0.0
    %230 = vmatpush1.msra.mxu0 %v66
    %231 = vmatprep.subr.mxu0 0.0
    %232 = vmatpush1.msra.mxu0 %v67
    %233 = vmatprep.subr.mxu0 0.0
    %234 = vmatpush1.msra.mxu0 %v68
    %235 = vmatprep.subr.mxu0 0.0
    %236 = vmatpush1.msra.mxu0 %v69
    %237 = vmatprep.mubr.f32.mxu0 %v31
    %238 = vmatmul.mubr.f32.gmra.mrb[0].mxu0 %v30
    %v239 = vpop.f32.mrb[0].mxu0
    %v240 = vadd.f32 %v171, %v239
    %v241 = vpop.f32.mrb[0].mxu0
    %242 = vdwg.mxu0
    %243 = vmatprep.subr.mxu0 0.0
    %244 = vmatpush1.msra.mxu0 %v70
    %245 = vmatprep.subr.mxu0 0.0
    %246 = vmatpush1.msra.mxu0 %v71
    %247 = vmatprep.subr.mxu0 0.0
    %248 = vmatpush1.msra.mxu0 %v72
    %249 = vmatprep.subr.mxu0 0.0
    %250 = vmatpush1.msra.mxu0 %v73
    %251 = vmatprep.subr.mxu0 0.0
    %252 = vmatpush1.msra.mxu0 %v74
    %253 = vmatprep.subr.mxu0 0.0
    %254 = vmatpush1.msra.mxu0 %v75
    %255 = vmatprep.subr.mxu0 0.0
    %256 = vmatpush1.msra.mxu0 %v76
    %257 = vmatprep.subr.mxu0 0.0
    %258 = vmatpush1.msra.mxu0 %v77
    %259 = vmatprep.subr.mxu0 0.0
    %260 = vmatpush1.msra.mxu0 %v78
    %261 = vmatprep.subr.mxu0 0.0
    %262 = vmatpush1.msra.mxu0 %v79
    %263 = vmatprep.subr.mxu0 0.0
    %264 = vmatpush1.msra.mxu0 %v80
    %265 = vmatprep.subr.mxu0 0.0
    %266 = vmatpush1.msra.mxu0 %v81
    %267 = vmatprep.subr.mxu0 0.0
    %268 = vmatpush1.msra.mxu0 %v82
    %269 = vmatprep.subr.mxu0 0.0
    %270 = vmatpush1.msra.mxu0 %v83
    %271 = vmatprep.subr.mxu0 0.0
    %272 = vmatpush1.msra.mxu0 %v84
    %273 = vmatprep.subr.mxu0 0.0
    %274 = vmatpush1.msra.mxu0 %v85
    %275 = vmatprep.subr.mxu0 0.0
    %276 = vmatpush1.msra.mxu0 %v86
    %277 = vmatprep.subr.mxu0 0.0
    %278 = vmatpush1.msra.mxu0 %v87
    %279 = vmatprep.subr.mxu0 0.0
    %280 = vmatpush1.msra.mxu0 %v88
    %281 = vmatprep.subr.mxu0 0.0
    %282 = vmatpush1.msra.mxu0 %v89
    %283 = vmatprep.subr.mxu0 0.0
    %284 = vmatpush1.msra.mxu0 %v90
    %285 = vmatprep.subr.mxu0 0.0
    %286 = vmatpush1.msra.mxu0 %v91
    %287 = vmatprep.subr.mxu0 0.0
    %288 = vmatpush1.msra.mxu0 %v92
    %289 = vmatprep.subr.mxu0 0.0
    %290 = vmatpush1.msra.mxu0 %v93
    %291 = vmatprep.subr.mxu0 0.0
    %292 = vmatpush1.msra.mxu0 %v94
    %293 = vmatprep.subr.mxu0 0.0
    %294 = vmatpush1.msra.mxu0 %v95
    %295 = vmatprep.subr.mxu0 0.0
    %296 = vmatpush1.msra.mxu0 %v96
    %297 = vmatprep.subr.mxu0 0.0
    %298 = vmatpush1.msra.mxu0 %v97
    %299 = vmatprep.subr.mxu0 0.0
    %300 = vmatpush1.msra.mxu0 %v98
    %301 = vmatprep.subr.mxu0 0.0
    %302 = vmatpush1.msra.mxu0 %v99
    %303 = vmatprep.subr.mxu0 0.0
    %304 = vmatpush1.msra.mxu0 %v100
    %305 = vmatprep.subr.mxu0 0.0
    %306 = vmatpush1.msra.mxu0 %v101
    %307 = vmatprep.mubr.f32.mxu0 %v33
    %308 = vmatmul.mubr.f32.gmra.mrb[0].mxu0 %v32
    %v309 = vpop.f32.mrb[0].mxu0
    %v310 = vadd.f32 %v240, %v309
    %v311 = vpop.f32.mrb[0].mxu0
    %312 = vdwg.mxu0
    %313 = vmatprep.subr.mxu0 0.0
    %314 = vmatpush1.msra.mxu0 %v102
    %315 = vmatprep.subr.mxu0 0.0
    %316 = vmatpush1.msra.mxu0 %v103
    %317 = vmatprep.subr.mxu0 0.0
    %318 = vmatpush1.msra.mxu0 %v104
    %319 = vmatprep.subr.mxu0 0.0
    %320 = vmatpush1.msra.mxu0 %v105
    %321 = vmatprep.subr.mxu0 0.0
    %322 = vmatpush1.msra.mxu0 %v106
    %323 = vmatprep.subr.mxu0 0.0
    %324 = vmatpush1.msra.mxu0 %v107
    %325 = vmatprep.subr.mxu0 0.0
    %326 = vmatpush1.msra.mxu0 %v108
    %327 = vmatprep.subr.mxu0 0.0
    %328 = vmatpush1.msra.mxu0 %v109
    %329 = vmatprep.subr.mxu0 0.0
    %330 = vmatpush1.msra.mxu0 %v110
    %331 = vmatprep.subr.mxu0 0.0
    %332 = vmatpush1.msra.mxu0 %v111
    %333 = vmatprep.subr.mxu0 0.0
    %334 = vmatpush1.msra.mxu0 %v112
    %335 = vmatprep.subr.mxu0 0.0
    %336 = vmatpush1.msra.mxu0 %v113
    %337 = vmatprep.subr.mxu0 0.0
    %338 = vmatpush1.msra.mxu0 %v114
    %339 = vmatprep.subr.mxu0 0.0
    %340 = vmatpush1.msra.mxu0 %v115
    %341 = vmatprep.subr.mxu0 0.0
    %342 = vmatpush1.msra.mxu0 %v116
    %343 = vmatprep.subr.mxu0 0.0
    %344 = vmatpush1.msra.mxu0 %v117
    %345 = vmatprep.subr.mxu0 0.0
    %346 = vmatpush1.msra.mxu0 %v118
    %347 = vmatprep.subr.mxu0 0.0
    %348 = vmatpush1.msra.mxu0 %v119
    %349 = vmatprep.subr.mxu0 0.0
    %350 = vmatpush1.msra.mxu0 %v120
    %351 = vmatprep.subr.mxu0 0.0
    %352 = vmatpush1.msra.mxu0 %v121
    %353 = vmatprep.subr.mxu0 0.0
    %354 = vmatpush1.msra.mxu0 %v122
    %355 = vmatprep.subr.mxu0 0.0
    %356 = vmatpush1.msra.mxu0 %v123
    %357 = vmatprep.subr.mxu0 0.0
    %358 = vmatpush1.msra.mxu0 %v124
    %359 = vmatprep.subr.mxu0 0.0
    %360 = vmatpush1.msra.mxu0 %v125
    %361 = vmatprep.subr.mxu0 0.0
    %362 = vmatpush1.msra.mxu0 %v126
    %363 = vmatprep.subr.mxu0 0.0
    %364 = vmatpush1.msra.mxu0 %v127
    %365 = vmatprep.subr.mxu0 0.0
    %366 = vmatpush1.msra.mxu0 %v128
    %367 = vmatprep.subr.mxu0 0.0
    %368 = vmatpush1.msra.mxu0 %v129
    %369 = vmatprep.subr.mxu0 0.0
    %370 = vmatpush1.msra.mxu0 %v130
    %371 = vmatprep.subr.mxu0 0.0
    %372 = vmatpush1.msra.mxu0 %v131
    %373 = vmatprep.subr.mxu0 0.0
    %374 = vmatpush1.msra.mxu0 %v132
    %375 = vmatprep.subr.mxu0 0.0
    %376 = vmatpush1.msra.mxu0 %v133
    %377 = vmatprep.mubr.f32.mxu0 %v35
    %378 = vmatmul.mubr.f32.gmra.mrb[0].mxu0 %v34
    %v379 = vpop.f32.mrb[0].mxu0
    %v380 = vadd.f32 %v310, %v379
    %v381 = vpop.f32.mrb[0].mxu0
    %382 = vdwg.mxu0
    %383 = vmatprep.subr.mxu0 0.0
    %384 = vmatpush1.msra.mxu0 %v134
    %385 = vmatprep.subr.mxu0 0.0
    %386 = vmatpush1.msra.mxu0 %v135
    %387 = vmatprep.subr.mxu0 0.0
    %388 = vmatpush1.msra.mxu0 %v136
    %389 = vmatprep.subr.mxu0 0.0
    %390 = vmatpush1.msra.mxu0 %v137
    %391 = vmatprep.subr.mxu0 0.0
    %392 = vmatpush1.msra.mxu0 %v138
    %393 = vmatprep.subr.mxu0 0.0
    %394 = vmatpush1.msra.mxu0 %v139
    %395 = vmatprep.subr.mxu0 0.0
    %396 = vmatpush1.msra.mxu0 %v140
    %397 = vmatprep.subr.mxu0 0.0
    %398 = vmatpush1.msra.mxu0 %v141
    %399 = vmatprep.subr.mxu0 0.0
    %400 = vmatpush1.msra.mxu0 %v142
    %401 = vmatprep.subr.mxu0 0.0
    %402 = vmatpush1.msra.mxu0 %v143
    %403 = vmatprep.subr.mxu0 0.0
    %404 = vmatpush1.msra.mxu0 %v144
    %405 = vmatprep.subr.mxu0 0.0
    %406 = vmatpush1.msra.mxu0 %v145
    %407 = vmatprep.subr.mxu0 0.0
    %408 = vmatpush1.msra.mxu0 %v146
    %409 = vmatprep.subr.mxu0 0.0
    %410 = vmatpush1.msra.mxu0 %v147
    %411 = vmatprep.subr.mxu0 0.0
    %412 = vmatpush1.msra.mxu0 %v148
    %413 = vmatprep.subr.mxu0 0.0
    %414 = vmatpush1.msra.mxu0 %v149
    %415 = vmatprep.subr.mxu0 0.0
    %416 = vmatpush1.msra.mxu0 %v150
    %417 = vmatprep.subr.mxu0 0.0
    %418 = vmatpush1.msra.mxu0 %v151
    %419 = vmatprep.subr.mxu0 0.0
    %420 = vmatpush1.msra.mxu0 %v152
    %421 = vmatprep.subr.mxu0 0.0
    %422 = vmatpush1.msra.mxu0 %v153
    %423 = vmatprep.subr.mxu0 0.0
    %424 = vmatpush1.msra.mxu0 %v154
    %425 = vmatprep.subr.mxu0 0.0
    %426 = vmatpush1.msra.mxu0 %v155
    %427 = vmatprep.subr.mxu0 0.0
    %428 = vmatpush1.msra.mxu0 %v156
    %429 = vmatprep.subr.mxu0 0.0
    %430 = vmatpush1.msra.mxu0 %v157
    %431 = vmatprep.subr.mxu0 0.0
    %432 = vmatpush1.msra.mxu0 %v158
    %433 = vmatprep.subr.mxu0 0.0
    %434 = vmatpush1.msra.mxu0 %v159
    %435 = vmatprep.subr.mxu0 0.0
    %436 = vmatpush1.msra.mxu0 %v160
    %437 = vmatprep.subr.mxu0 0.0
    %438 = vmatpush1.msra.mxu0 %v161
    %439 = vmatprep.subr.mxu0 0.0
    %440 = vmatpush1.msra.mxu0 %v162
    %441 = vmatprep.subr.mxu0 0.0
    %442 = vmatpush1.msra.mxu0 %v163
    %443 = vmatprep.subr.mxu0 0.0
    %444 = vmatpush1.msra.mxu0 %v164
    %445 = vmatprep.subr.mxu0 0.0
    %446 = vmatpush1.msra.mxu0 %v165
    %447 = vmatprep.mubr.f32.mxu0 %v37
    %448 = vmatmul.mubr.f32.gmra.mrb[0].mxu0 %v36
    %v449 = vpop.f32.mrb[0].mxu0
    %v450 = vadd.f32 %v380, %v449
    %v451 = vpop.f32.mrb[0].mxu0
    %452 = vdwg.mxu0
    %v453 = vld [vmem:[%s3] sm:$0xff]
    %v454 = vld [vmem:[%s3 + $0x8] sm:$0xff]
    %v455 = vld [vmem:[%s3 + $0x10] sm:$0xff]
    %v456 = vld [vmem:[%s3 + $0x18] sm:$0xff]
    %v457 = vld [vmem:[%s3 + $0x20] sm:$0xff]
    %v458 = vld [vmem:[%s3 + $0x28] sm:$0xff]
    %v459 = vld [vmem:[%s3 + $0x30] sm:$0xff]
    %v460 = vld [vmem:[%s3 + $0x38] sm:$0xff]
    %vm461 = vcmask 130048
    %v463 = vsel %vm461, %v450, 0
    %465 = vmatprep.subr.mxu0 %v454
    %466 = vmatpush1.msra.mxu0 %v453
    %467 = vmatprep.subr.mxu0 %v458
    %468 = vmatpush1.msra.mxu0 %v457
    %469 = vmatprep.subr.mxu0 0.0
    %470 = vmatpush1.msra.mxu0 0.0
    %471 = vmatprep.subr.mxu0 0.0
    %472 = vmatpush1.msra.mxu0 0.0
    %473 = vmatprep.subr.mxu0 0.0
    %474 = vmatpush1.msra.mxu0 0.0
    %475 = vmatprep.subr.mxu0 0.0
    %476 = vmatpush1.msra.mxu0 0.0
    %477 = vmatprep.subr.mxu0 0.0
    %478 = vmatpush1.msra.mxu0 0.0
    %479 = vmatprep.subr.mxu0 0.0
    %480 = vmatpush1.msra.mxu0 0.0
    %481 = vmatprep.subr.mxu0 0.0
    %482 = vmatpush1.msra.mxu0 0.0
    %483 = vmatprep.subr.mxu0 0.0
    %484 = vmatpush1.msra.mxu0 0.0
    %485 = vmatprep.subr.mxu0 0.0
    %486 = vmatpush1.msra.mxu0 0.0
    %487 = vmatprep.subr.mxu0 0.0
    %488 = vmatpush1.msra.mxu0 0.0
    %489 = vmatprep.subr.mxu0 0.0
    %490 = vmatpush1.msra.mxu0 0.0
    %491 = vmatprep.subr.mxu0 0.0
    %492 = vmatpush1.msra.mxu0 0.0
    %493 = vmatprep.subr.mxu0 0.0
    %494 = vmatpush1.msra.mxu0 0.0
    %495 = vmatprep.subr.mxu0 0.0
    %496 = vmatpush1.msra.mxu0 0.0
    %497 = vmatprep.subr.mxu0 0.0
    %498 = vmatpush1.msra.mxu0 0.0
    %499 = vmatprep.subr.mxu0 0.0
    %500 = vmatpush1.msra.mxu0 0.0
    %501 = vmatprep.subr.mxu0 0.0
    %502 = vmatpush1.msra.mxu0 0.0
    %503 = vmatprep.subr.mxu0 0.0
    %504 = vmatpush1.msra.mxu0 0.0
    %505 = vmatprep.subr.mxu0 0.0
    %506 = vmatpush1.msra.mxu0 0.0
    %507 = vmatprep.subr.mxu0 0.0
    %508 = vmatpush1.msra.mxu0 0.0
    %509 = vmatprep.subr.mxu0 0.0
    %510 = vmatpush1.msra.mxu0 0.0
    %511 = vmatprep.subr.mxu0 0.0
    %512 = vmatpush1.msra.mxu0 0.0
    %513 = vmatprep.subr.mxu0 0.0
    %514 = vmatpush1.msra.mxu0 0.0
    %515 = vmatprep.subr.mxu0 0.0
    %516 = vmatpush1.msra.mxu0 0.0
    %517 = vmatprep.subr.mxu0 0.0
    %518 = vmatpush1.msra.mxu0 0.0
    %519 = vmatprep.subr.mxu0 0.0
    %520 = vmatpush1.msra.mxu0 0.0
    %521 = vmatprep.subr.mxu0 0.0
    %522 = vmatpush1.msra.mxu0 0.0
    %523 = vmatprep.subr.mxu0 0.0
    %524 = vmatpush1.msra.mxu0 0.0
    %525 = vmatprep.subr.mxu0 0.0
    %526 = vmatpush1.msra.mxu0 0.0
    %527 = vmatprep.subr.mxu0 0.0
    %528 = vmatpush1.msra.mxu0 0.0
    %529 = vmatprep.mubr.f32.mxu0 0.0
    %530 = vmatmul.mubr.f32.gmra.mrb[0].mxu0 %v463
    %v531 = vpop.f32.mrb[0].mxu0
    %v532 = vadd.f32 0.0, %v531
    %v533 = vpop.f32.mrb[0].mxu0
    %v534 = vadd.f32 0.0, %v533
    %535 = vdwg.mxu0
    %536 = vmatprep.subr.mxu0 %v456
    %537 = vmatpush1.msra.mxu0 %v455
    %538 = vmatprep.subr.mxu0 %v460
    %539 = vmatpush1.msra.mxu0 %v459
    %540 = vmatprep.subr.mxu0 0.0
    %541 = vmatpush1.msra.mxu0 0.0
    %542 = vmatprep.subr.mxu0 0.0
    %543 = vmatpush1.msra.mxu0 0.0
    %544 = vmatprep.subr.mxu0 0.0
    %545 = vmatpush1.msra.mxu0 0.0
    %546 = vmatprep.subr.mxu0 0.0
    %547 = vmatpush1.msra.mxu0 0.0
    %548 = vmatprep.subr.mxu0 0.0
    %549 = vmatpush1.msra.mxu0 0.0
    %550 = vmatprep.subr.mxu0 0.0
    %551 = vmatpush1.msra.mxu0 0.0
    %552 = vmatprep.subr.mxu0 0.0
    %553 = vmatpush1.msra.mxu0 0.0
    %554 = vmatprep.subr.mxu0 0.0
    %555 = vmatpush1.msra.mxu0 0.0
    %556 = vmatprep.subr.mxu0 0.0
    %557 = vmatpush1.msra.mxu0 0.0
    %558 = vmatprep.subr.mxu0 0.0
    %559 = vmatpush1.msra.mxu0 0.0
    %560 = vmatprep.subr.mxu0 0.0
    %561 = vmatpush1.msra.mxu0 0.0
    %562 = vmatprep.subr.mxu0 0.0
    %563 = vmatpush1.msra.mxu0 0.0
    %564 = vmatprep.subr.mxu0 0.0
    %565 = vmatpush1.msra.mxu0 0.0
    %566 = vmatprep.subr.mxu0 0.0
    %567 = vmatpush1.msra.mxu0 0.0
    %568 = vmatprep.subr.mxu0 0.0
    %569 = vmatpush1.msra.mxu0 0.0
    %570 = vmatprep.subr.mxu0 0.0
    %571 = vmatpush1.msra.mxu0 0.0
    %572 = vmatprep.subr.mxu0 0.0
    %573 = vmatpush1.msra.mxu0 0.0
    %574 = vmatprep.subr.mxu0 0.0
    %575 = vmatpush1.msra.mxu0 0.0
    %576 = vmatprep.subr.mxu0 0.0
    %577 = vmatpush1.msra.mxu0 0.0
    %578 = vmatprep.subr.mxu0 0.0
    %579 = vmatpush1.msra.mxu0 0.0
    %580 = vmatprep.subr.mxu0 0.0
    %581 = vmatpush1.msra.mxu0 0.0
    %582 = vmatprep.subr.mxu0 0.0
    %583 = vmatpush1.msra.mxu0 0.0
    %584 = vmatprep.subr.mxu0 0.0
    %585 = vmatpush1.msra.mxu0 0.0
    %586 = vmatprep.subr.mxu0 0.0
    %587 = vmatpush1.msra.mxu0 0.0
    %588 = vmatprep.subr.mxu0 0.0
    %589 = vmatpush1.msra.mxu0 0.0
    %590 = vmatprep.subr.mxu0 0.0
    %591 = vmatpush1.msra.mxu0 0.0
    %592 = vmatprep.subr.mxu0 0.0
    %593 = vmatpush1.msra.mxu0 0.0
    %594 = vmatprep.subr.mxu0 0.0
    %595 = vmatpush1.msra.mxu0 0.0
    %596 = vmatprep.subr.mxu0 0.0
    %597 = vmatpush1.msra.mxu0 0.0
    %598 = vmatprep.subr.mxu0 0.0
    %599 = vmatpush1.msra.mxu0 0.0
    %600 = vmatprep.mubr.f32.mxu0 0.0
    %601 = vmatmul.mubr.f32.gmra.mrb[0].mxu0 %v463
    %v602 = vpop.f32.mrb[0].mxu0
    %v603 = vadd.f32 0.0, %v602
    %v604 = vpop.f32.mrb[0].mxu0
    %v605 = vadd.f32 0.0, %v604
    %606 = vdwg.mxu0
    %v607 = vld [vmem:[%s4] sm:$0xf]
    %v609 = vlaneseq
    %v610 = vshrl.u32 %v609, 7
    %v611 = vsub.s32 0, %v610
    %v612 = vrot.slane %v607, %v611
    %v613 = vlaneseq
    %v614 = vshrl.u32 %v613, 7
    %v615 = vsub.s32 1, %v614
    %v616 = vrot.slane %v607, %v615
    %v617 = vlaneseq
    %v618 = vshrl.u32 %v617, 7
    %v619 = vsub.s32 2, %v618
    %v620 = vrot.slane %v607, %v619
    %v621 = vlaneseq
    %v622 = vshrl.u32 %v621, 7
    %v623 = vsub.s32 3, %v622
    %v624 = vrot.slane %v607, %v623
    %v629 = vsub.f32 %v612, %v532
    %v630 = vsub.f32 %v616, %v534
    %v631 = vsub.f32 %v620, %v603
    %v632 = vsub.f32 %v624, %v605
    %v633 = vlaneseq
    %v634 = vand.u32 %v633, 127
    %v635 = vadd.s32 %v634, 128
    %vm636 = vcmp.le.f32.partialorder %v629, %v630
    %v637 = vsel %vm636, %v629, %v630
    %v638 = vsel %vm636, %v634, %v635
    %v639 = vadd.s32 %v634, 256
    %vm640 = vcmp.le.f32.partialorder %v637, %v631
    %v641 = vsel %vm640, %v637, %v631
    %v642 = vsel %vm640, %v638, %v639
    %v643 = vadd.s32 %v634, 384
    %vm644 = vcmp.le.f32.partialorder %v641, %v632
    %v645 = vsel %vm644, %v641, %v632
    %v646 = vsel %vm644, %v642, %v643
    %647 = vmin.index.xlane.f32.xlu0 %v645
    %v648 = vpop.xlane.xlu0 %647
    %649 = vset.pattern.permute.xlu0 %v648
    %650 = vperm.xlu0 %649, %v646
    %v651 = vpop.permute.xlu0 %650
    %vm652 = vcmp.eq.s32.totalorder %v634, %v651
    %vm653 = vcmp.eq.s32.totalorder %v635, %v651
    %vm654 = vcmp.eq.s32.totalorder %v639, %v651
    %vm655 = vcmp.eq.s32.totalorder %v643, %v651
    %v656 = vsel %vm652, 1, 0
    %v657 = vsel %vm653, 1, 0
    %v658 = vsel %vm654, 1, 0
    %v659 = vsel %vm655, 1, 0
    %v660 = vcvt.s32.f32 %v656
    %v661 = vcvt.s32.f32 %v657
    %v662 = vcvt.s32.f32 %v658
    %v663 = vcvt.s32.f32 %v659
    %664 = vmatprep.subr.mxu0 %v454
    %665 = vmatpush1.xpose.msra.mxu0 %v453
    %666 = vmatprep.subr.mxu0 %v458
    %667 = vmatpush1.xpose.msra.mxu0 %v457
    %668 = vmatprep.subr.mxu0 0.0
    %669 = vmatpush1.xpose.msra.mxu0 0.0
    %670 = vmatprep.subr.mxu0 0.0
    %671 = vmatpush1.xpose.msra.mxu0 0.0
    %672 = vmatprep.subr.mxu0 0.0
    %673 = vmatpush1.xpose.msra.mxu0 0.0
    %674 = vmatprep.subr.mxu0 0.0
    %675 = vmatpush1.xpose.msra.mxu0 0.0
    %676 = vmatprep.subr.mxu0 0.0
    %677 = vmatpush1.xpose.msra.mxu0 0.0
    %678 = vmatprep.subr.mxu0 0.0
    %679 = vmatpush1.xpose.msra.mxu0 0.0
    %680 = vmatprep.subr.mxu0 0.0
    %681 = vmatpush1.xpose.msra.mxu0 0.0
    %682 = vmatprep.subr.mxu0 0.0
    %683 = vmatpush1.xpose.msra.mxu0 0.0
    %684 = vmatprep.subr.mxu0 0.0
    %685 = vmatpush1.xpose.msra.mxu0 0.0
    %686 = vmatprep.subr.mxu0 0.0
    %687 = vmatpush1.xpose.msra.mxu0 0.0
    %688 = vmatprep.subr.mxu0 0.0
    %689 = vmatpush1.xpose.msra.mxu0 0.0
    %690 = vmatprep.subr.mxu0 0.0
    %691 = vmatpush1.xpose.msra.mxu0 0.0
    %692 = vmatprep.subr.mxu0 0.0
    %693 = vmatpush1.xpose.msra.mxu0 0.0
    %694 = vmatprep.subr.mxu0 0.0
    %695 = vmatpush1.xpose.msra.mxu0 0.0
    %696 = vmatprep.subr.mxu0 0.0
    %697 = vmatpush1.xpose.msra.mxu0 0.0
    %698 = vmatprep.subr.mxu0 0.0
    %699 = vmatpush1.xpose.msra.mxu0 0.0
    %700 = vmatprep.subr.mxu0 0.0
    %701 = vmatpush1.xpose.msra.mxu0 0.0
    %702 = vmatprep.subr.mxu0 0.0
    %703 = vmatpush1.xpose.msra.mxu0 0.0
    %704 = vmatprep.subr.mxu0 0.0
    %705 = vmatpush1.xpose.msra.mxu0 0.0
    %706 = vmatprep.subr.mxu0 0.0
    %707 = vmatpush1.xpose.msra.mxu0 0.0
    %708 = vmatprep.subr.mxu0 0.0
    %709 = vmatpush1.xpose.msra.mxu0 0.0
    %710 = vmatprep.subr.mxu0 0.0
    %711 = vmatpush1.xpose.msra.mxu0 0.0
    %712 = vmatprep.subr.mxu0 0.0
    %713 = vmatpush1.xpose.msra.mxu0 0.0
    %714 = vmatprep.subr.mxu0 0.0
    %715 = vmatpush1.xpose.msra.mxu0 0.0
    %716 = vmatprep.subr.mxu0 0.0
    %717 = vmatpush1.xpose.msra.mxu0 0.0
    %718 = vmatprep.subr.mxu0 0.0
    %719 = vmatpush1.xpose.msra.mxu0 0.0
    %720 = vmatprep.subr.mxu0 0.0
    %721 = vmatpush1.xpose.msra.mxu0 0.0
    %722 = vmatprep.subr.mxu0 0.0
    %723 = vmatpush1.xpose.msra.mxu0 0.0
    %724 = vmatprep.subr.mxu0 0.0
    %725 = vmatpush1.xpose.msra.mxu0 0.0
    %726 = vmatprep.subr.mxu0 0.0
    %727 = vmatpush1.xpose.msra.mxu0 0.0
    %728 = vmatprep.mubr.f32.mxu0 %v661
    %729 = vmatmul.mubr.f32.gmra.mrb[0].mxu0 %v660
    %v730 = vpop.f32.mrb[0].mxu0
    %v731 = vadd.f32 0.0, %v730
    %v732 = vpop.f32.mrb[0].mxu0
    %733 = vdwg.mxu0
    %734 = vmatprep.subr.mxu0 %v456
    %735 = vmatpush1.xpose.msra.mxu0 %v455
    %736 = vmatprep.subr.mxu0 %v460
    %737 = vmatpush1.xpose.msra.mxu0 %v459
    %738 = vmatprep.subr.mxu0 0.0
    %739 = vmatpush1.xpose.msra.mxu0 0.0
    %740 = vmatprep.subr.mxu0 0.0
    %741 = vmatpush1.xpose.msra.mxu0 0.0
    %742 = vmatprep.subr.mxu0 0.0
    %743 = vmatpush1.xpose.msra.mxu0 0.0
    %744 = vmatprep.subr.mxu0 0.0
    %745 = vmatpush1.xpose.msra.mxu0 0.0
    %746 = vmatprep.subr.mxu0 0.0
    %747 = vmatpush1.xpose.msra.mxu0 0.0
    %748 = vmatprep.subr.mxu0 0.0
    %749 = vmatpush1.xpose.msra.mxu0 0.0
    %750 = vmatprep.subr.mxu0 0.0
    %751 = vmatpush1.xpose.msra.mxu0 0.0
    %752 = vmatprep.subr.mxu0 0.0
    %753 = vmatpush1.xpose.msra.mxu0 0.0
    %754 = vmatprep.subr.mxu0 0.0
    %755 = vmatpush1.xpose.msra.mxu0 0.0
    %756 = vmatprep.subr.mxu0 0.0
    %757 = vmatpush1.xpose.msra.mxu0 0.0
    %758 = vmatprep.subr.mxu0 0.0
    %759 = vmatpush1.xpose.msra.mxu0 0.0
    %760 = vmatprep.subr.mxu0 0.0
    %761 = vmatpush1.xpose.msra.mxu0 0.0
    %762 = vmatprep.subr.mxu0 0.0
    %763 = vmatpush1.xpose.msra.mxu0 0.0
    %764 = vmatprep.subr.mxu0 0.0
    %765 = vmatpush1.xpose.msra.mxu0 0.0
    %766 = vmatprep.subr.mxu0 0.0
    %767 = vmatpush1.xpose.msra.mxu0 0.0
    %768 = vmatprep.subr.mxu0 0.0
    %769 = vmatpush1.xpose.msra.mxu0 0.0
    %770 = vmatprep.subr.mxu0 0.0
    %771 = vmatpush1.xpose.msra.mxu0 0.0
    %772 = vmatprep.subr.mxu0 0.0
    %773 = vmatpush1.xpose.msra.mxu0 0.0
    %774 = vmatprep.subr.mxu0 0.0
    %775 = vmatpush1.xpose.msra.mxu0 0.0
    %776 = vmatprep.subr.mxu0 0.0
    %777 = vmatpush1.xpose.msra.mxu0 0.0
    %778 = vmatprep.subr.mxu0 0.0
    %779 = vmatpush1.xpose.msra.mxu0 0.0
    %780 = vmatprep.subr.mxu0 0.0
    %781 = vmatpush1.xpose.msra.mxu0 0.0
    %782 = vmatprep.subr.mxu0 0.0
    %783 = vmatpush1.xpose.msra.mxu0 0.0
    %784 = vmatprep.subr.mxu0 0.0
    %785 = vmatpush1.xpose.msra.mxu0 0.0
    %786 = vmatprep.subr.mxu0 0.0
    %787 = vmatpush1.xpose.msra.mxu0 0.0
    %788 = vmatprep.subr.mxu0 0.0
    %789 = vmatpush1.xpose.msra.mxu0 0.0
    %790 = vmatprep.subr.mxu0 0.0
    %791 = vmatpush1.xpose.msra.mxu0 0.0
    %792 = vmatprep.subr.mxu0 0.0
    %793 = vmatpush1.xpose.msra.mxu0 0.0
    %794 = vmatprep.subr.mxu0 0.0
    %795 = vmatpush1.xpose.msra.mxu0 0.0
    %796 = vmatprep.subr.mxu0 0.0
    %797 = vmatpush1.xpose.msra.mxu0 0.0
    %798 = vmatprep.mubr.f32.mxu0 %v663
    %799 = vmatmul.mubr.f32.gmra.mrb[0].mxu0 %v662
    %v800 = vpop.f32.mrb[0].mxu0
    %v801 = vadd.f32 %v731, %v800
    %v802 = vpop.f32.mrb[0].mxu0
    %803 = vdwg.mxu0
    %v804 = vsel %vm461, %v801, %v450
    %v805 = vld [vmem:[%s5] sm:$0xff]
    %v806 = vld [vmem:[%s5 + $0x8] sm:$0xff]
    %v807 = vld [vmem:[%s5 + $0x10] sm:$0xff]
    %v808 = vld [vmem:[%s5 + $0x18] sm:$0xff]
    %v809 = vld [vmem:[%s5 + $0x20] sm:$0xff]
    %v810 = vld [vmem:[%s5 + $0x28] sm:$0xff]
    %v811 = vld [vmem:[%s5 + $0x30] sm:$0xff]
    %v812 = vld [vmem:[%s5 + $0x38] sm:$0xff]
    %v813 = vld [vmem:[%s5 + $0x40] sm:$0xff]
    %v814 = vld [vmem:[%s5 + $0x48] sm:$0xff]
    %v815 = vld [vmem:[%s5 + $0x50] sm:$0xff]
    %v816 = vld [vmem:[%s5 + $0x58] sm:$0xff]
    %v817 = vld [vmem:[%s5 + $0x60] sm:$0xff]
    %v818 = vld [vmem:[%s5 + $0x68] sm:$0xff]
    %v819 = vld [vmem:[%s5 + $0x70] sm:$0xff]
    %v820 = vld [vmem:[%s5 + $0x78] sm:$0xff]
    %v821 = vld [vmem:[%s5 + $0x80] sm:$0xff]
    %v822 = vld [vmem:[%s5 + $0x88] sm:$0xff]
    %v823 = vld [vmem:[%s5 + $0x90] sm:$0xff]
    %v824 = vld [vmem:[%s5 + $0x98] sm:$0xff]
    %v825 = vld [vmem:[%s5 + $0xa0] sm:$0xff]
    %v826 = vld [vmem:[%s5 + $0xa8] sm:$0xff]
    %v827 = vld [vmem:[%s5 + $0xb0] sm:$0xff]
    %v828 = vld [vmem:[%s5 + $0xb8] sm:$0xff]
    %v829 = vld [vmem:[%s5 + $0xc0] sm:$0xff]
    %v830 = vld [vmem:[%s5 + $0xc8] sm:$0xff]
    %v831 = vld [vmem:[%s5 + $0xd0] sm:$0xff]
    %v832 = vld [vmem:[%s5 + $0xd8] sm:$0xff]
    %v833 = vld [vmem:[%s5 + $0xe0] sm:$0xff]
    %v834 = vld [vmem:[%s5 + $0xe8] sm:$0xff]
    %v835 = vld [vmem:[%s5 + $0xf0] sm:$0xff]
    %v836 = vld [vmem:[%s5 + $0xf8] sm:$0xff]
    %v837 = vld [vmem:[%s6] sm:$0xff]
    %v839 = vlaneseq
    %v840 = vshrl.u32 %v839, 7
    %v841 = vsub.s32 0, %v840
    %v842 = vrot.slane %v837, %v841
    %v843 = vlaneseq
    %v844 = vshrl.u32 %v843, 7
    %v845 = vsub.s32 1, %v844
    %v846 = vrot.slane %v837, %v845
    %v847 = vlaneseq
    %v848 = vshrl.u32 %v847, 7
    %v849 = vsub.s32 2, %v848
    %v850 = vrot.slane %v837, %v849
    %v851 = vlaneseq
    %v852 = vshrl.u32 %v851, 7
    %v853 = vsub.s32 3, %v852
    %v854 = vrot.slane %v837, %v853
    %v855 = vlaneseq
    %v856 = vshrl.u32 %v855, 7
    %v857 = vsub.s32 4, %v856
    %v858 = vrot.slane %v837, %v857
    %v859 = vlaneseq
    %v860 = vshrl.u32 %v859, 7
    %v861 = vsub.s32 5, %v860
    %v862 = vrot.slane %v837, %v861
    %v863 = vlaneseq
    %v864 = vshrl.u32 %v863, 7
    %v865 = vsub.s32 6, %v864
    %v866 = vrot.slane %v837, %v865
    %v867 = vlaneseq
    %v868 = vshrl.u32 %v867, 7
    %v869 = vsub.s32 7, %v868
    %v870 = vrot.slane %v837, %v869
    %vm879 = vcmask 261120
    %v881 = vsel %vm879, %v804, 0
    %883 = vmatprep.subr.mxu0 %v806
    %884 = vmatpush1.msra.mxu0 %v805
    %885 = vmatprep.subr.mxu0 %v814
    %886 = vmatpush1.msra.mxu0 %v813
    %887 = vmatprep.subr.mxu0 %v822
    %888 = vmatpush1.msra.mxu0 %v821
    %889 = vmatprep.subr.mxu0 %v830
    %890 = vmatpush1.msra.mxu0 %v829
    %891 = vmatprep.subr.mxu0 0.0
    %892 = vmatpush1.msra.mxu0 0.0
    %893 = vmatprep.subr.mxu0 0.0
    %894 = vmatpush1.msra.mxu0 0.0
    %895 = vmatprep.subr.mxu0 0.0
    %896 = vmatpush1.msra.mxu0 0.0
    %897 = vmatprep.subr.mxu0 0.0
    %898 = vmatpush1.msra.mxu0 0.0
    %899 = vmatprep.subr.mxu0 0.0
    %900 = vmatpush1.msra.mxu0 0.0
    %901 = vmatprep.subr.mxu0 0.0
    %902 = vmatpush1.msra.mxu0 0.0
    %903 = vmatprep.subr.mxu0 0.0
    %904 = vmatpush1.msra.mxu0 0.0
    %905 = vmatprep.subr.mxu0 0.0
    %906 = vmatpush1.msra.mxu0 0.0
    %907 = vmatprep.subr.mxu0 0.0
    %908 = vmatpush1.msra.mxu0 0.0
    %909 = vmatprep.subr.mxu0 0.0
    %910 = vmatpush1.msra.mxu0 0.0
    %911 = vmatprep.subr.mxu0 0.0
    %912 = vmatpush1.msra.mxu0 0.0
    %913 = vmatprep.subr.mxu0 0.0
    %914 = vmatpush1.msra.mxu0 0.0
    %915 = vmatprep.subr.mxu0 0.0
    %916 = vmatpush1.msra.mxu0 0.0
    %917 = vmatprep.subr.mxu0 0.0
    %918 = vmatpush1.msra.mxu0 0.0
    %919 = vmatprep.subr.mxu0 0.0
    %920 = vmatpush1.msra.mxu0 0.0
    %921 = vmatprep.subr.mxu0 0.0
    %922 = vmatpush1.msra.mxu0 0.0
    %923 = vmatprep.subr.mxu0 0.0
    %924 = vmatpush1.msra.mxu0 0.0
    %925 = vmatprep.subr.mxu0 0.0
    %926 = vmatpush1.msra.mxu0 0.0
    %927 = vmatprep.subr.mxu0 0.0
    %928 = vmatpush1.msra.mxu0 0.0
    %929 = vmatprep.subr.mxu0 0.0
    %930 = vmatpush1.msra.mxu0 0.0
    %931 = vmatprep.subr.mxu0 0.0
    %932 = vmatpush1.msra.mxu0 0.0
    %933 = vmatprep.subr.mxu0 0.0
    %934 = vmatpush1.msra.mxu0 0.0
    %935 = vmatprep.subr.mxu0 0.0
    %936 = vmatpush1.msra.mxu0 0.0
    %937 = vmatprep.subr.mxu0 0.0
    %938 = vmatpush1.msra.mxu0 0.0
    %939 = vmatprep.subr.mxu0 0.0
    %940 = vmatpush1.msra.mxu0 0.0
    %941 = vmatprep.subr.mxu0 0.0
    %942 = vmatpush1.msra.mxu0 0.0
    %943 = vmatprep.subr.mxu0 0.0
    %944 = vmatpush1.msra.mxu0 0.0
    %945 = vmatprep.subr.mxu0 0.0
    %946 = vmatpush1.msra.mxu0 0.0
    %947 = vmatprep.mubr.f32.mxu0 0.0
    %948 = vmatmul.mubr.f32.gmra.mrb[0].mxu0 %v881
    %v949 = vpop.f32.mrb[0].mxu0
    %v950 = vadd.f32 %v842, %v949
    %v951 = vpop.f32.mrb[0].mxu0
    %v952 = vadd.f32 %v846, %v951
    %953 = vdwg.mxu0
    %954 = vmatprep.subr.mxu0 %v808
    %955 = vmatpush1.msra.mxu0 %v807
    %956 = vmatprep.subr.mxu0 %v816
    %957 = vmatpush1.msra.mxu0 %v815
    %958 = vmatprep.subr.mxu0 %v824
    %959 = vmatpush1.msra.mxu0 %v823
    %960 = vmatprep.subr.mxu0 %v832
    %961 = vmatpush1.msra.mxu0 %v831
    %962 = vmatprep.subr.mxu0 0.0
    %963 = vmatpush1.msra.mxu0 0.0
    %964 = vmatprep.subr.mxu0 0.0
    %965 = vmatpush1.msra.mxu0 0.0
    %966 = vmatprep.subr.mxu0 0.0
    %967 = vmatpush1.msra.mxu0 0.0
    %968 = vmatprep.subr.mxu0 0.0
    %969 = vmatpush1.msra.mxu0 0.0
    %970 = vmatprep.subr.mxu0 0.0
    %971 = vmatpush1.msra.mxu0 0.0
    %972 = vmatprep.subr.mxu0 0.0
    %973 = vmatpush1.msra.mxu0 0.0
    %974 = vmatprep.subr.mxu0 0.0
    %975 = vmatpush1.msra.mxu0 0.0
    %976 = vmatprep.subr.mxu0 0.0
    %977 = vmatpush1.msra.mxu0 0.0
    %978 = vmatprep.subr.mxu0 0.0
    %979 = vmatpush1.msra.mxu0 0.0
    %980 = vmatprep.subr.mxu0 0.0
    %981 = vmatpush1.msra.mxu0 0.0
    %982 = vmatprep.subr.mxu0 0.0
    %983 = vmatpush1.msra.mxu0 0.0
    %984 = vmatprep.subr.mxu0 0.0
    %985 = vmatpush1.msra.mxu0 0.0
    %986 = vmatprep.subr.mxu0 0.0
    %987 = vmatpush1.msra.mxu0 0.0
    %988 = vmatprep.subr.mxu0 0.0
    %989 = vmatpush1.msra.mxu0 0.0
    %990 = vmatprep.subr.mxu0 0.0
    %991 = vmatpush1.msra.mxu0 0.0
    %992 = vmatprep.subr.mxu0 0.0
    %993 = vmatpush1.msra.mxu0 0.0
    %994 = vmatprep.subr.mxu0 0.0
    %995 = vmatpush1.msra.mxu0 0.0
    %996 = vmatprep.subr.mxu0 0.0
    %997 = vmatpush1.msra.mxu0 0.0
    %998 = vmatprep.subr.mxu0 0.0
    %999 = vmatpush1.msra.mxu0 0.0
    %1000 = vmatprep.subr.mxu0 0.0
    %1001 = vmatpush1.msra.mxu0 0.0
    %1002 = vmatprep.subr.mxu0 0.0
    %1003 = vmatpush1.msra.mxu0 0.0
    %1004 = vmatprep.subr.mxu0 0.0
    %1005 = vmatpush1.msra.mxu0 0.0
    %1006 = vmatprep.subr.mxu0 0.0
    %1007 = vmatpush1.msra.mxu0 0.0
    %1008 = vmatprep.subr.mxu0 0.0
    %1009 = vmatpush1.msra.mxu0 0.0
    %1010 = vmatprep.subr.mxu0 0.0
    %1011 = vmatpush1.msra.mxu0 0.0
    %1012 = vmatprep.subr.mxu0 0.0
    %1013 = vmatpush1.msra.mxu0 0.0
    %1014 = vmatprep.subr.mxu0 0.0
    %1015 = vmatpush1.msra.mxu0 0.0
    %1016 = vmatprep.subr.mxu0 0.0
    %1017 = vmatpush1.msra.mxu0 0.0
    %1018 = vmatprep.mubr.f32.mxu0 0.0
    %1019 = vmatmul.mubr.f32.gmra.mrb[0].mxu0 %v881
    %v1020 = vpop.f32.mrb[0].mxu0
    %v1021 = vadd.f32 %v850, %v1020
    %v1022 = vpop.f32.mrb[0].mxu0
    %v1023 = vadd.f32 %v854, %v1022
    %1024 = vdwg.mxu0
    %1025 = vmatprep.subr.mxu0 %v810
    %1026 = vmatpush1.msra.mxu0 %v809
    %1027 = vmatprep.subr.mxu0 %v818
    %1028 = vmatpush1.msra.mxu0 %v817
    %1029 = vmatprep.subr.mxu0 %v826
    %1030 = vmatpush1.msra.mxu0 %v825
    %1031 = vmatprep.subr.mxu0 %v834
    %1032 = vmatpush1.msra.mxu0 %v833
    %1033 = vmatprep.subr.mxu0 0.0
    %1034 = vmatpush1.msra.mxu0 0.0
    %1035 = vmatprep.subr.mxu0 0.0
    %1036 = vmatpush1.msra.mxu0 0.0
    %1037 = vmatprep.subr.mxu0 0.0
    %1038 = vmatpush1.msra.mxu0 0.0
    %1039 = vmatprep.subr.mxu0 0.0
    %1040 = vmatpush1.msra.mxu0 0.0
    %1041 = vmatprep.subr.mxu0 0.0
    %1042 = vmatpush1.msra.mxu0 0.0
    %1043 = vmatprep.subr.mxu0 0.0
    %1044 = vmatpush1.msra.mxu0 0.0
    %1045 = vmatprep.subr.mxu0 0.0
    %1046 = vmatpush1.msra.mxu0 0.0
    %1047 = vmatprep.subr.mxu0 0.0
    %1048 = vmatpush1.msra.mxu0 0.0
    %1049 = vmatprep.subr.mxu0 0.0
    %1050 = vmatpush1.msra.mxu0 0.0
    %1051 = vmatprep.subr.mxu0 0.0
    %1052 = vmatpush1.msra.mxu0 0.0
    %1053 = vmatprep.subr.mxu0 0.0
    %1054 = vmatpush1.msra.mxu0 0.0
    %1055 = vmatprep.subr.mxu0 0.0
    %1056 = vmatpush1.msra.mxu0 0.0
    %1057 = vmatprep.subr.mxu0 0.0
    %1058 = vmatpush1.msra.mxu0 0.0
    %1059 = vmatprep.subr.mxu0 0.0
    %1060 = vmatpush1.msra.mxu0 0.0
    %1061 = vmatprep.subr.mxu0 0.0
    %1062 = vmatpush1.msra.mxu0 0.0
    %1063 = vmatprep.subr.mxu0 0.0
    %1064 = vmatpush1.msra.mxu0 0.0
    %1065 = vmatprep.subr.mxu0 0.0
    %1066 = vmatpush1.msra.mxu0 0.0
    %1067 = vmatprep.subr.mxu0 0.0
    %1068 = vmatpush1.msra.mxu0 0.0
    %1069 = vmatprep.subr.mxu0 0.0
    %1070 = vmatpush1.msra.mxu0 0.0
    %1071 = vmatprep.subr.mxu0 0.0
    %1072 = vmatpush1.msra.mxu0 0.0
    %1073 = vmatprep.subr.mxu0 0.0
    %1074 = vmatpush1.msra.mxu0 0.0
    %1075 = vmatprep.subr.mxu0 0.0
    %1076 = vmatpush1.msra.mxu0 0.0
    %1077 = vmatprep.subr.mxu0 0.0
    %1078 = vmatpush1.msra.mxu0 0.0
    %1079 = vmatprep.subr.mxu0 0.0
    %1080 = vmatpush1.msra.mxu0 0.0
    %1081 = vmatprep.subr.mxu0 0.0
    %1082 = vmatpush1.msra.mxu0 0.0
    %1083 = vmatprep.subr.mxu0 0.0
    %1084 = vmatpush1.msra.mxu0 0.0
    %1085 = vmatprep.subr.mxu0 0.0
    %1086 = vmatpush1.msra.mxu0 0.0
    %1087 = vmatprep.subr.mxu0 0.0
    %1088 = vmatpush1.msra.mxu0 0.0
    %1089 = vmatprep.mubr.f32.mxu0 0.0
    %1090 = vmatmul.mubr.f32.gmra.mrb[0].mxu0 %v881
    %v1091 = vpop.f32.mrb[0].mxu0
    %v1092 = vadd.f32 %v858, %v1091
    %v1093 = vpop.f32.mrb[0].mxu0
    %v1094 = vadd.f32 %v862, %v1093
    %1095 = vdwg.mxu0
    %1096 = vmatprep.subr.mxu0 %v812
    %1097 = vmatpush1.msra.mxu0 %v811
    %1098 = vmatprep.subr.mxu0 %v820
    %1099 = vmatpush1.msra.mxu0 %v819
    %1100 = vmatprep.subr.mxu0 %v828
    %1101 = vmatpush1.msra.mxu0 %v827
    %1102 = vmatprep.subr.mxu0 %v836
    %1103 = vmatpush1.msra.mxu0 %v835
    %1104 = vmatprep.subr.mxu0 0.0
    %1105 = vmatpush1.msra.mxu0 0.0
    %1106 = vmatprep.subr.mxu0 0.0
    %1107 = vmatpush1.msra.mxu0 0.0
    %1108 = vmatprep.subr.mxu0 0.0
    %1109 = vmatpush1.msra.mxu0 0.0
    %1110 = vmatprep.subr.mxu0 0.0
    %1111 = vmatpush1.msra.mxu0 0.0
    %1112 = vmatprep.subr.mxu0 0.0
    %1113 = vmatpush1.msra.mxu0 0.0
    %1114 = vmatprep.subr.mxu0 0.0
    %1115 = vmatpush1.msra.mxu0 0.0
    %1116 = vmatprep.subr.mxu0 0.0
    %1117 = vmatpush1.msra.mxu0 0.0
    %1118 = vmatprep.subr.mxu0 0.0
    %1119 = vmatpush1.msra.mxu0 0.0
    %1120 = vmatprep.subr.mxu0 0.0
    %1121 = vmatpush1.msra.mxu0 0.0
    %1122 = vmatprep.subr.mxu0 0.0
    %1123 = vmatpush1.msra.mxu0 0.0
    %1124 = vmatprep.subr.mxu0 0.0
    %1125 = vmatpush1.msra.mxu0 0.0
    %1126 = vmatprep.subr.mxu0 0.0
    %1127 = vmatpush1.msra.mxu0 0.0
    %1128 = vmatprep.subr.mxu0 0.0
    %1129 = vmatpush1.msra.mxu0 0.0
    %1130 = vmatprep.subr.mxu0 0.0
    %1131 = vmatpush1.msra.mxu0 0.0
    %1132 = vmatprep.subr.mxu0 0.0
    %1133 = vmatpush1.msra.mxu0 0.0
    %1134 = vmatprep.subr.mxu0 0.0
    %1135 = vmatpush1.msra.mxu0 0.0
    %1136 = vmatprep.subr.mxu0 0.0
    %1137 = vmatpush1.msra.mxu0 0.0
    %1138 = vmatprep.subr.mxu0 0.0
    %1139 = vmatpush1.msra.mxu0 0.0
    %1140 = vmatprep.subr.mxu0 0.0
    %1141 = vmatpush1.msra.mxu0 0.0
    %1142 = vmatprep.subr.mxu0 0.0
    %1143 = vmatpush1.msra.mxu0 0.0
    %1144 = vmatprep.subr.mxu0 0.0
    %1145 = vmatpush1.msra.mxu0 0.0
    %1146 = vmatprep.subr.mxu0 0.0
    %1147 = vmatpush1.msra.mxu0 0.0
    %1148 = vmatprep.subr.mxu0 0.0
    %1149 = vmatpush1.msra.mxu0 0.0
    %1150 = vmatprep.subr.mxu0 0.0
    %1151 = vmatpush1.msra.mxu0 0.0
    %1152 = vmatprep.subr.mxu0 0.0
    %1153 = vmatpush1.msra.mxu0 0.0
    %1154 = vmatprep.subr.mxu0 0.0
    %1155 = vmatpush1.msra.mxu0 0.0
    %1156 = vmatprep.subr.mxu0 0.0
    %1157 = vmatpush1.msra.mxu0 0.0
    %1158 = vmatprep.subr.mxu0 0.0
    %1159 = vmatpush1.msra.mxu0 0.0
    %1160 = vmatprep.mubr.f32.mxu0 0.0
    %1161 = vmatmul.mubr.f32.gmra.mrb[0].mxu0 %v881
    %v1162 = vpop.f32.mrb[0].mxu0
    %v1163 = vadd.f32 %v866, %v1162
    %v1164 = vpop.f32.mrb[0].mxu0
    %v1165 = vadd.f32 %v870, %v1164
    %1166 = vdwg.mxu0
    %1167 = vst [vmem:[#allocation2] sm:$0xff] %v950
    %1168 = vst [vmem:[#allocation2 + $0x8] sm:$0xff] %v952
    %1169 = vst [vmem:[#allocation2 + $0x10] sm:$0xff] %v1021
    %1170 = vst [vmem:[#allocation2 + $0x18] sm:$0xff] %v1023
    %1171 = vst [vmem:[#allocation2 + $0x20] sm:$0xff] %v1092
    %1172 = vst [vmem:[#allocation2 + $0x28] sm:$0xff] %v1094
    %1173 = vst [vmem:[#allocation2 + $0x30] sm:$0xff] %v1163
    %1174 = vst [vmem:[#allocation2 + $0x38] sm:$0xff] %v1165
    %1175 = vrot.lane.b32.xlu0 %v804, 16
    %v1176 = vpop.permute.xlu0 %1175
    %v1178 = vsel %vm461, %v450, %v1176
    %vm1179 = vcmask 392192
    %1180 = vst.msk [vmem:[#allocation4] sm:$0xff] %vm1179, %v1178
    // Predicated region
    $region30: #{tpu_custom_call.1} parent=1 // pred_check
      _
    $region31: #{tpu_custom_call.1} parent=1 // pred_check_branch
      %1182 = sbr.rel (0) target = $region33
    $region32: #{tpu_custom_call.1} parent=1 // pred_region
      %s1184 = ssub.s32 1024, 1024
      %1185 = vsyncadd [#allocation3], %s1184
      %s1187 = sshll.u32 [#allocation2], 4
      %s1188 = int_to_ptr.vmem [resolvable:$true] %s1187
      %1190 = dma.vmem_to_hbm [thread:$0]  %s1188, 1024, %s7, [#allocation3]
    $region33: #{tpu_custom_call.1} parent=1 // pred_fallthru
      _
    // Predicated region
    $region34: #{tpu_custom_call.1} parent=1 // pred_check
      _
    $region35: #{tpu_custom_call.1} parent=1 // pred_check_branch
      %1192 = sbr.rel (0) target = $region37
    $region36: #{tpu_custom_call.1} parent=1 // pred_region
      %s1194 = ssub.s32 128, 128
      %1195 = vsyncadd [#allocation5], %s1194
      %s1197 = sshll.u32 [#allocation4], 4
      %s1198 = int_to_ptr.vmem [resolvable:$true] %s1197
      %1200 = dma.vmem_to_hbm [thread:$0]  %s1198, 128, %s8, [#allocation5]
    $region37: #{tpu_custom_call.1} parent=1 // pred_fallthru
      _
    // Predicated region
    $region38: #{tpu_custom_call.1} parent=1 // pred_check
      _
    $region39: #{tpu_custom_call.1} parent=1 // pred_check_branch
      %1202 = sbr.rel (0) target = $region41
    $region40: #{tpu_custom_call.1} parent=1 // pred_region
      %1203 = dma.done [#allocation3], 1024
    $region41: #{tpu_custom_call.1} parent=1 // pred_fallthru
      _
    // Predicated region
    $region42: #{tpu_custom_call.1} parent=1 // pred_check
      _
    $region43: #{tpu_custom_call.1} parent=1 // pred_check_branch
      %1205 = sbr.rel (0) target = $region45
    $region44: #{tpu_custom_call.1} parent=1 // pred_region
      %1206 = dma.done [#allocation5], 128
    $region45: #{tpu_custom_call.1} parent=1 // pred_fallthru
      _
    %1207 = vsyncpa [#allocation3], 1
    %1208 = vsyncpa [#allocation5], 1

</llo_original>
